<compile_context>
chip_gen: v7x
topology: tpu7x:2x2x1
jax: 0.10.0
libtpu: 0.0.40
codegen_flags: <defaults>
</compile_context>

<pallas_src>
import functools

import jax
import jax.numpy as jnp
from jax.experimental import pallas as pl
from jax.experimental.pallas import tpu as pltpu

INPUT_SIZE = 768
OUTPUT_SIZE = 1


def _round_up(x: int, m: int) -> int:
    return ((x + m - 1) // m) * m


def linear_kernel(x_ref, w_ref, b_ref, o_ref):
    # x_ref: (TB, K) VMEM   w_ref: (1, K) VMEM   b_ref: (1, 1) SMEM   o_ref: (TB, 1) VMEM
    prod = x_ref[...] * w_ref[...]                        # VPU, sublane-broadcast of w
    s = jnp.sum(prod, axis=-1, keepdims=True)             # XLU lane reduction -> (TB, 1)
    o_ref[...] = (s + b_ref[0, 0]).astype(o_ref.dtype)    # SMEM scalar bias, VPU add


def _choose_batch_tile(batch: int, block_rows: int, sublane: int) -> int:
    """Pick the batch tile: (a) sublane-granular, (b) capped by `block_rows` so the
    double-buffered x tile stays within the VMEM budget, (c) an even number of
    tiles for large batches so v7x's two TensorCores split the grid evenly."""
    if batch <= block_rows:
        return _round_up(batch, sublane)
    n_tiles = pl.cdiv(batch, block_rows)
    n_tiles = _round_up(n_tiles, 2)                       # multiple of the 2 TCs on v7x
    return _round_up(pl.cdiv(batch, n_tiles), sublane)


@functools.partial(jax.jit, static_argnames=("block_rows",))
def linear_forward(x, weight, bias, *, block_rows: int = 2048):
    """x: (B, in), weight: (out, in) [PyTorch layout], bias: (out,). out == 1."""
    B, K = x.shape
    N = weight.shape[0]
    assert N == OUTPUT_SIZE and weight.shape[1] == K and bias.shape == (N,)

    x_itemsize = jnp.dtype(x.dtype).itemsize
    w_itemsize = jnp.dtype(weight.dtype).itemsize
    sublane = 8 * (4 // x_itemsize)                       # 8 for f32, 16 for bf16

    tb = _choose_batch_tile(B, block_rows, sublane)
    grid = (pl.cdiv(B, tb),)                              # partial last block is masked

    # Explicit scoped-VMEM budget: double-buffered x + weight + output + slack.
    vmem_bytes = (2 * tb * K * x_itemsize
                  + 2 * N * K * w_itemsize
                  + 2 * tb * N * x_itemsize
                  + (4 << 20))
    vmem_limit = int(min(max(vmem_bytes, 16 << 20), 48 << 20))

    out = pl.pallas_call(
        linear_kernel,
        out_shape=jax.ShapeDtypeStruct((B, N), x.dtype),
        grid=grid,
        in_specs=[
            pl.BlockSpec((tb, K), lambda i: (i, 0)),              # x tile
            pl.BlockSpec((N, K), lambda i: (0, 0)),               # weight, native (1, K)
            pl.BlockSpec(memory_space=pltpu.MemorySpace.SMEM),    # bias scalar
        ],
        out_specs=pl.BlockSpec((tb, N), lambda i: (i, 0)),
        compiler_params=pltpu.CompilerParams(
            dimension_semantics=("parallel",),
            vmem_limit_bytes=vmem_limit,
        ),
        cost_estimate=pl.CostEstimate(
            flops=2 * B * K,
            transcendentals=0,
            bytes_accessed=B * K * x_itemsize
            + N * K * w_itemsize
            + B * N * x_itemsize,
        ),
    )(x, weight, bias.reshape(1, 1))

    return out


if __name__ == "__main__":
    key = jax.random.PRNGKey(0)
    kx, kw, kb = jax.random.split(key, 3)

    batch = 8
    x = jax.random.normal(kx, (batch, INPUT_SIZE), dtype=jnp.float32)

    # Deterministic parameter init (PyTorch Linear default: U(-1/sqrt(in), 1/sqrt(in)))
    bound = 1.0 / (INPUT_SIZE ** 0.5)
    weight = jax.random.uniform(kw, (OUTPUT_SIZE, INPUT_SIZE),
                                minval=-bound, maxval=bound, dtype=jnp.float32)
    bias = jax.random.uniform(kb, (OUTPUT_SIZE,),
                              minval=-bound, maxval=bound, dtype=jnp.float32)

    # Small-batch check (single full tile, grid=(1,)).
    out = jax.block_until_ready(linear_forward(x, weight, bias))
    ref = x @ weight.T + bias
    assert out.shape == (batch, OUTPUT_SIZE)
    assert jnp.allclose(out, ref, atol=1e-4, rtol=1e-4)

    # Non-sublane-multiple batch -> single partial block, masked write-back,
    # no wrapper padding.
    batch2 = 13
    x2 = jax.random.normal(kx, (batch2, INPUT_SIZE), dtype=jnp.float32)
    out2 = jax.block_until_ready(linear_forward(x2, weight, bias))
    ref2 = x2 @ weight.T + bias
    assert out2.shape == (batch2, OUTPUT_SIZE)
    assert jnp.allclose(out2, ref2, atol=1e-4, rtol=1e-4)

    # Multi-tile batch, not a multiple of the tile -> grid=(2,) (balanced for v7x's
    # two TCs), partial last block, no jnp.pad HBM copy, no out[:B] slice.
    batch3 = 3000
    x3 = jax.random.normal(kx, (batch3, INPUT_SIZE), dtype=jnp.float32)
    out3 = jax.block_until_ready(linear_forward(x3, weight, bias))
    ref3 = x3 @ weight.T + bias
    assert out3.shape == (batch3, OUTPUT_SIZE)
    assert jnp.allclose(out3, ref3, atol=1e-4, rtol=1e-4)

    print("KERNEL_OK")
</pallas_src>

<mosaic_0001>
module attributes {stable_mosaic.version = 11 : i64} {
  func.func @linear_kernel(%arg0: i32, %arg1: memref<8x768xf32, #tpu.memory_space<vmem>>, %arg2: memref<1x768xf32, #tpu.memory_space<vmem>>, %arg3: memref<1x1xf32, #tpu.memory_space<smem>>, %arg4: memref<8x1xf32, #tpu.memory_space<vmem>>) attributes {dimension_semantics = [#tpu.dimension_semantics<parallel>], iteration_bounds = array<i64: 1>, scalar_prefetch = 0 : i64, scratch_operands = 0 : i64, tpu.core_type = #tpu.core_type<tc>, window_params = [{transform_indices = @transform_0, window_bounds = array<i64: 8, 768>}, {pipeline_mode = #tpu.pipeline_mode<synchronous>, transform_indices = @transform_1, window_bounds = array<i64: 1, 768>}, {transform_indices = @transform_2, window_bounds = array<i64: 1, 1>}, {transform_indices = @transform_3, window_bounds = array<i64: 8, 1>}]} {
    %c0 = arith.constant 0 : index
    %c0_0 = arith.constant 0 : index
    %0 = vector.load %arg1[%c0, %c0_0] : memref<8x768xf32, #tpu.memory_space<vmem>>, vector<8x768xf32>
    %c0_1 = arith.constant 0 : index
    %c0_2 = arith.constant 0 : index
    %1 = vector.load %arg2[%c0_1, %c0_2] : memref<1x768xf32, #tpu.memory_space<vmem>>, vector<1x768xf32>
    %2 = vector.broadcast %1 : vector<1x768xf32> to vector<8x768xf32>
    %3 = arith.mulf %0, %2 : vector<8x768xf32>
    %cst = arith.constant dense<0.000000e+00> : vector<8xf32>
    %4 = vector.multi_reduction <add>, %3, %cst [1] : vector<8x768xf32> to vector<8xf32>
    %5 = vector.shape_cast %4 : vector<8xf32> to vector<8x1xf32>
    %c0_3 = arith.constant 0 : index
    %c0_4 = arith.constant 0 : index
    %6 = memref.load %arg3[%c0_3, %c0_4] : memref<1x1xf32, #tpu.memory_space<smem>>
    %7 = vector.broadcast %6 : f32 to vector<8x1xf32>
    %8 = arith.addf %5, %7 : vector<8x1xf32>
    %c0_5 = arith.constant 0 : index
    %c0_6 = arith.constant 0 : index
    %9 = vector.load %arg4[%c0_5, %c0_6] : memref<8x1xf32, #tpu.memory_space<vmem>>, vector<8x1xf32>
    tpu.vector_store %arg4[%c0_5, %c0_6], %8 {strides = array<i32>} : memref<8x1xf32, #tpu.memory_space<vmem>>, vector<8x1xf32>,
    return
  }
  func.func @transform_0(%arg0: i32) -> (i32, i32) {
    %c0_i32 = arith.constant 0 : i32
    %c0_i32_0 = arith.constant 0 : i32
    return %arg0, %c0_i32 : i32, i32
  }
  func.func @transform_1(%arg0: i32) -> (i32, i32) {
    %c0_i32 = arith.constant 0 : i32
    %c0_i32_0 = arith.constant 0 : i32
    %c0_i32_1 = arith.constant 0 : i32
    return %c0_i32, %c0_i32_0 : i32, i32
  }
  func.func @transform_2(%arg0: i32) -> (i32, i32) {
    %c0_i32 = arith.constant 0 : i32
    %c0_i32_0 = arith.constant 0 : i32
    %c0_i32_1 = arith.constant 0 : i32
    return %c0_i32, %c0_i32_0 : i32, i32
  }
  func.func @transform_3(%arg0: i32) -> (i32, i32) {
    %c0_i32 = arith.constant 0 : i32
    %c0_i32_0 = arith.constant 0 : i32
    return %arg0, %c0_i32 : i32, i32
  }
}

</mosaic_0001>

<llo_original>
// kernel: linear_forward.1
$region0: #{linear_forward.1}
  #allocation0 [shape = 'u32[]', space=smem, size = 0x4, offset = 0x4, fixed_abs, tag = 'smem constant byte address 0x4 - core index']
  #allocation1 [shape = 'u32[144,128]{1,0:T(1,128)}', space=vmem, size = 0x12000, scoped, tag = 'internal scratch']
  #allocation2 [shape = 'f32[1,1]{1,0:T(1,128)S(6)}', space=smem, size = 0x200, scoped, tag = 'scoped memory for linear_forward.1']
  %s0 = inlined_call_operand.hbm [shape: f32[8,768], index: 0, kind: input, shape index: {}]
  %s1 = inlined_call_operand.vmem [shape: f32[1,768], index: 1, kind: input, shape index: {}]
  %s2 = inlined_call_operand.<no memory space> [shape: f32[1,1], index: 2, kind: input, shape index: {}]
  %s3 = inlined_call_operand.vmem [shape: f32[8,1], index: 3, kind: output, shape index: {}]
  %s4 = sld [smem:[#allocation0]]
  $region26: #{linear_forward.1} parent=0
    _
  %s6 = ssub.s32 1, %s4
  %s7 = scalar_select 0, %s6, %s4
  %8 = sst [smem:[#allocation2]] %s2
  $region1: #{linear_forward.1} parent=0
    #allocation3 [shape = 'u8[24576]{0}', space=vmem, size = 0x6000, scoped, tag = 'input window, operand 0, single buffered']
    #allocation4 [shape = 's32[1]{0}', space=sflag, size = 0x4, scoped, tag = 'scoped memory for linear_forward.1']
    %9 = vsyncpa [#allocation4], 0
    // Predicated region
    $region2: #{linear_forward.1} parent=1 // pred_check
      _
    $region3: #{linear_forward.1} parent=1 // pred_check_branch
      %11 = sbr.rel (0) target = $region5
    $region4: #{linear_forward.1} parent=1 // pred_region
      %s13 = ssub.s32 768, 768
      %14 = vsyncadd [#allocation4], %s13
      %s16 = sshll.u32 [#allocation3], 4
      %s17 = int_to_ptr.vmem [resolvable:$true] %s16
      %19 = dma.hbm_to_vmem [thread:$0]  %s0, 768, %s17, [#allocation4]
    $region5: #{linear_forward.1} parent=1 // pred_fallthru
      _
    // Predicated region
    $region6: #{linear_forward.1} parent=1 // pred_check
      _
    $region7: #{linear_forward.1} parent=1 // pred_check_branch
      %21 = sbr.rel (0) target = $region9
    $region8: #{linear_forward.1} parent=1 // pred_region
      _
    $region9: #{linear_forward.1} parent=1 // pred_fallthru
      _
    // Predicated region
    $region10: #{linear_forward.1} parent=1 // pred_check
      _
    $region11: #{linear_forward.1} parent=1 // pred_check_branch
      %23 = sbr.rel (0) target = $region13
    $region12: #{linear_forward.1} parent=1 // pred_region
      _
    $region13: #{linear_forward.1} parent=1 // pred_fallthru
      _
    // Predicated region
    $region14: #{linear_forward.1} parent=1 // pred_check
      _
    $region15: #{linear_forward.1} parent=1 // pred_check_branch
      %25 = sbr.rel (0) target = $region17
    $region16: #{linear_forward.1} parent=1 // pred_region
      %26 = dma.done [#allocation4], 768
    $region17: #{linear_forward.1} parent=1 // pred_fallthru
      _
    %v27 = vld [vmem:[#allocation3] sm:$0xff]
    %v28 = vld [vmem:[#allocation3 + $0x8] sm:$0xff]
    %v29 = vld [vmem:[#allocation3 + $0x10] sm:$0xff]
    %v30 = vld [vmem:[#allocation3 + $0x18] sm:$0xff]
    %v31 = vld [vmem:[#allocation3 + $0x20] sm:$0xff]
    %v32 = vld [vmem:[#allocation3 + $0x28] sm:$0xff]
    %v33 = vld [vmem:[%s1] sm:$0x3f]
    %v35 = vlaneseq
    %v36 = vshrl.u32 %v35, 7
    %v37 = vsub.s32 0, %v36
    %v38 = vrot.slane %v33, %v37
    %v39 = vlaneseq
    %v40 = vshrl.u32 %v39, 7
    %v41 = vsub.s32 1, %v40
    %v42 = vrot.slane %v33, %v41
    %v43 = vlaneseq
    %v44 = vshrl.u32 %v43, 7
    %v45 = vsub.s32 2, %v44
    %v46 = vrot.slane %v33, %v45
    %v47 = vlaneseq
    %v48 = vshrl.u32 %v47, 7
    %v49 = vsub.s32 3, %v48
    %v50 = vrot.slane %v33, %v49
    %v51 = vlaneseq
    %v52 = vshrl.u32 %v51, 7
    %v53 = vsub.s32 4, %v52
    %v54 = vrot.slane %v33, %v53
    %v55 = vlaneseq
    %v56 = vshrl.u32 %v55, 7
    %v57 = vsub.s32 5, %v56
    %v58 = vrot.slane %v33, %v57
    %v65 = vmul.f32 %v27, %v38
    %v66 = vmul.f32 %v28, %v42
    %v67 = vmul.f32 %v29, %v46
    %v68 = vmul.f32 %v30, %v50
    %v69 = vmul.f32 %v31, %v54
    %v70 = vmul.f32 %v32, %v58
    %v71 = vadd.f32 %v65, %v66
    %v72 = vadd.f32 %v71, %v67
    %v73 = vadd.f32 %v72, %v68
    %v74 = vadd.f32 %v73, %v69
    %v75 = vadd.f32 %v74, %v70
    %76 = vadd.xlane.f32.xlu0 %v75
    %v77 = vpop.xlane.xlu0 %76
    %s78 = sld [smem:[#allocation2]]
    %v79 = vstv %s78
    %v80 = vadd.f32 %v77, %v79
    %vm81 = vcmask 7168
    %82 = vst.msk [vmem:[%s3] sm:$0xff] %vm81, %v80
    // Predicated region
    $region18: #{linear_forward.1} parent=1 // pred_check
      _
    $region19: #{linear_forward.1} parent=1 // pred_check_branch
      %84 = sbr.rel (0) target = $region21
    $region20: #{linear_forward.1} parent=1 // pred_region
      _
    $region21: #{linear_forward.1} parent=1 // pred_fallthru
      _
    // Predicated region
    $region22: #{linear_forward.1} parent=1 // pred_check
      _
    $region23: #{linear_forward.1} parent=1 // pred_check_branch
      %86 = sbr.rel (0) target = $region25
    $region24: #{linear_forward.1} parent=1 // pred_region
      _
    $region25: #{linear_forward.1} parent=1 // pred_fallthru
      _
    %87 = vsyncpa [#allocation4], 1

</llo_original>
